<compile_context>
chip_gen: v5e
topology: v5e:2x2
jax: 0.10.0
libtpu: 0.0.40
codegen_flags: <defaults>
</compile_context>

<pallas_src>
import jax
import jax.numpy as jnp
from jax.experimental import pallas as pl
from jax.experimental.pallas import tpu as pltpu

LANES = 128  # vreg lane width; all weight columns are padded to this


# ------------------------------ parameter init --------------------------------

def init_actor_params(key, s_dim, belief_dim, a_dim, h_dim):
    """Deterministic synthetic nn.Linear-style params. Weights stored (in, out)."""
    keys = iter(jax.random.split(key, 16))

    def lin(fan_in, fan_out):
        s = 1.0 / jnp.sqrt(jnp.float32(fan_in))
        w = jax.random.uniform(next(keys), (fan_in, fan_out), jnp.float32, -s, s)
        b = jax.random.uniform(next(keys), (1, fan_out), jnp.float32, -s, s)
        return w, b

    p = {}
    w1, p["b1"] = lin(s_dim + belief_dim, h_dim)
    p["w1s"], p["w1b"] = w1[:s_dim], w1[s_dim:]          # split for the concat trick
    p["w2"], p["b2"] = lin(h_dim, h_dim)
    p["w3"], p["b3"] = lin(h_dim, h_dim)
    p["w4"], p["b4"] = lin(h_dim, h_dim)
    wm, bm = lin(h_dim, a_dim)
    ws, bs = lin(h_dim, a_dim)
    p["w5"] = jnp.concatenate([wm, ws], axis=1)          # fused mean/std head
    p["b5"] = jnp.concatenate([bm, bs], axis=1)
    return p


# --------------------------- weight-slab packing -------------------------------

def _round_up8(n):
    return -(-n // 8) * 8


def _pad_block(w, rows, cols=LANES):
    r, c = w.shape
    return jnp.pad(w.astype(jnp.float32), ((0, rows - r), (0, cols - c)))


def pack_actor_params(p):
    """Pack all weights/biases into one tile-aligned (rows, 128) f32 VMEM slab.

    Hidden-layer weights are padded to (128, 128) so activations stay 128-lane
    wide through the whole MLP (padded lanes are exactly zero -> exact math).
    The 5 biases live in rows 0..4 of one trailing (8, 128) block.
    """
    s_dim = p["w1s"].shape[0]
    bel_dim = p["w1b"].shape[0]
    h_dim = p["w2"].shape[0]
    out2 = p["w5"].shape[1]
    assert h_dim <= LANES and out2 <= LANES, "h_dim / 2*a_dim must fit in 128 lanes"

    s_pad = _round_up8(s_dim)
    b_pad = _round_up8(bel_dim)

    blocks = [
        ("w1s", _pad_block(p["w1s"], s_pad)),
        ("w1b", _pad_block(p["w1b"], b_pad)),
        ("w2", _pad_block(p["w2"], LANES)),
        ("w3", _pad_block(p["w3"], LANES)),
        ("w4", _pad_block(p["w4"], LANES)),
        ("w5", _pad_block(p["w5"], LANES)),
    ]
    bias = jnp.zeros((8, LANES), jnp.float32)
    for i, name in enumerate(("b1", "b2", "b3", "b4", "b5")):
        b = p[name].reshape(-1)
        bias = bias.at[i, : b.shape[0]].set(b.astype(jnp.float32))
    blocks.append(("bias", bias))

    offs, row = {}, 0
    for name, blk in blocks:
        offs[name] = row
        row += blk.shape[0]
    slab = jnp.concatenate([blk for _, blk in blocks], axis=0)

    return dict(
        slab=slab, offs=offs,
        s_dim=s_dim, bel_dim=bel_dim, s_pad=s_pad, b_pad=b_pad,
        h_dim=h_dim, a_dim=out2 // 2,
    )


# --------------------------------- wrapper ------------------------------------

def _default_block_b(batch):
    """Large, 8-aligned batch tiles; >=2 grid steps when batch allows (v7x)."""
    if batch < 16 or batch % 8 != 0:
        return batch
    for cand in (1024, 512, 256, 128, 64, 32, 16, 8):
        if cand <= batch // 2 and batch % cand == 0:
            return cand
    return batch


def _pad_cols(x, to):
    return x if x.shape[1] == to else jnp.pad(x, ((0, 0), (0, to - x.shape[1])))


def actor_forward(packed, state, belief, *, block_b=None):
    """Returns (mean, std) — same semantics as Actor.forward(state, belief)."""
    slab = packed["slab"]
    offs = packed["offs"]
    a_dim = packed["a_dim"]
    s_pad = packed["s_pad"]
    b_pad = packed["b_pad"]

    batch = state.shape[0]
    state = _pad_cols(state.astype(jnp.float32), s_pad)
    belief = _pad_cols(belief.astype(jnp.float32), b_pad)

    if block_b is None:
        block_b = _default_block_b(batch)
    assert batch % block_b == 0, "batch must be a multiple of block_b"
    assert block_b == batch or block_b % 8 == 0, \
        "block_b must be a multiple of 8 (f32 sublane tiling) or equal to batch"
    grid = (batch // block_b,)

    # Static row offsets into the slab (all multiples of 8).
    o_w1s, o_w1b = offs["w1s"], offs["w1b"]
    o_w2, o_w3, o_w4, o_w5 = offs["w2"], offs["w3"], offs["w4"], offs["w5"]
    o_b = offs["bias"]
    slab_rows = slab.shape[0]

    def kernel(state_ref, belief_ref, slab_ref, out_ref):
        f32 = jnp.float32
        bias = slab_ref[o_b:o_b + 8, :]                      # (8,128): rows 0..4 = b1..b5

        # fc1 on cat(state, belief): two matmuls (mathematically identical).
        h = (
            jnp.dot(state_ref[...], slab_ref[o_w1s:o_w1s + s_pad, :],
                    preferred_element_type=f32)
            + jnp.dot(belief_ref[...], slab_ref[o_w1b:o_w1b + b_pad, :],
                      preferred_element_type=f32)
            + bias[0:1, :]
        )
        h = jnp.maximum(h, 0.0)
        h = jnp.maximum(jnp.dot(h, slab_ref[o_w2:o_w2 + LANES, :],
                                preferred_element_type=f32) + bias[1:2, :], 0.0)
        h = jnp.maximum(jnp.dot(h, slab_ref[o_w3:o_w3 + LANES, :],
                                preferred_element_type=f32) + bias[2:3, :], 0.0)
        h = jnp.maximum(jnp.dot(h, slab_ref[o_w4:o_w4 + LANES, :],
                                preferred_element_type=f32) + bias[3:4, :], 0.0)

        # Fused mean/std head: one (128,128) matmul; lanes [0,a_dim)=mean,
        # [a_dim,2*a_dim)=exp(clip(logstd)); lanes >= 2*a_dim are zero padding.
        y = jnp.dot(h, slab_ref[o_w5:o_w5 + LANES, :],
                    preferred_element_type=f32) + bias[4:5, :]
        lane = jax.lax.broadcasted_iota(jnp.int32, y.shape, dimension=1)
        is_std = (lane >= a_dim) & (lane < 2 * a_dim)
        out_ref[...] = jnp.where(is_std, jnp.exp(jnp.clip(y, -2.0, 2.0)), y)

    packed_out = pl.pallas_call(
        kernel,
        out_shape=jax.ShapeDtypeStruct((batch, LANES), jnp.float32),
        grid=grid,
        in_specs=[
            pl.BlockSpec((block_b, s_pad), lambda i: (i, 0)),
            pl.BlockSpec((block_b, b_pad), lambda i: (i, 0)),
            pl.BlockSpec((slab_rows, LANES), lambda i: (0, 0)),   # VMEM-resident slab
        ],
        out_specs=pl.BlockSpec((block_b, LANES), lambda i: (i, 0)),
        compiler_params=pltpu.CompilerParams(dimension_semantics=("parallel",)),
    )(state, belief, slab)

    return packed_out[:, :a_dim], packed_out[:, a_dim:2 * a_dim]


# ----------------------------- pure-JAX reference ------------------------------

def actor_forward_ref(p, state, belief):
    x = jnp.concatenate([state, belief], axis=1)
    w1 = jnp.concatenate([p["w1s"], p["w1b"]], axis=0)
    h = jax.nn.relu(x @ w1 + p["b1"])
    h = jax.nn.relu(h @ p["w2"] + p["b2"])
    h = jax.nn.relu(h @ p["w3"] + p["b3"])
    h = jax.nn.relu(h @ p["w4"] + p["b4"])
    y = h @ p["w5"] + p["b5"]
    a_dim = p["w5"].shape[1] // 2
    mean = y[:, :a_dim]
    std = jnp.exp(jnp.clip(y[:, a_dim:], -2.0, 2.0))
    return mean, std


# ----------------------------------- main --------------------------------------

if __name__ == "__main__":
    import numpy as np

    s_dim, belief_dim, a_dim, h_dim = 24, 32, 16, 32

    key = jax.random.PRNGKey(0)
    kp, ks, kb, ks2, kb2 = jax.random.split(key, 5)
    params = init_actor_params(kp, s_dim, belief_dim, a_dim, h_dim)
    packed_params = pack_actor_params(params)

    # Large batch: amortizes fixed overhead; default tiling gives grid (2,) of
    # 128-row tiles so the batch axis shards across both TensorCores on v7x.
    batch = 256
    state = jax.random.normal(ks, (batch, s_dim), jnp.float32)
    belief = jax.random.normal(kb, (batch, belief_dim), jnp.float32)

    mean, std = jax.block_until_ready(actor_forward(packed_params, state, belief))
    ref_mean, ref_std = actor_forward_ref(params, state, belief)
    np.testing.assert_allclose(np.asarray(mean), np.asarray(ref_mean), rtol=1e-5, atol=1e-5)
    np.testing.assert_allclose(np.asarray(std), np.asarray(ref_std), rtol=1e-5, atol=1e-5)

    # Small-batch sanity check (single full-array block, grid (1,)).
    batch_s = 8
    state_s = jax.random.normal(ks2, (batch_s, s_dim), jnp.float32)
    belief_s = jax.random.normal(kb2, (batch_s, belief_dim), jnp.float32)
    mean_s, std_s = jax.block_until_ready(actor_forward(packed_params, state_s, belief_s))
    ref_mean_s, ref_std_s = actor_forward_ref(params, state_s, belief_s)
    np.testing.assert_allclose(np.asarray(mean_s), np.asarray(ref_mean_s), rtol=1e-5, atol=1e-5)
    np.testing.assert_allclose(np.asarray(std_s), np.asarray(ref_std_s), rtol=1e-5, atol=1e-5)

    # TODO(synk): get_policy_logprob (Normal sampling + tanh-squashed log-prob) is a
    # stochastic host-side head and is intentionally not kernelized.
    print("KERNEL_OK")
</pallas_src>

<mosaic_0001>
module attributes {stable_mosaic.version = 11 : i64} {
  func.func @kernel(%arg0: i32, %arg1: memref<128x24xf32, #tpu.memory_space<vmem>>, %arg2: memref<128x32xf32, #tpu.memory_space<vmem>>, %arg3: memref<576x128xf32, #tpu.memory_space<vmem>>, %arg4: memref<128x128xf32, #tpu.memory_space<vmem>>) attributes {dimension_semantics = [#tpu.dimension_semantics<parallel>], iteration_bounds = array<i64: 2>, scalar_prefetch = 0 : i64, scratch_operands = 0 : i64, tpu.core_type = #tpu.core_type<tc>, window_params = [{transform_indices = @transform_0, window_bounds = array<i64: 128, 24>}, {transform_indices = @transform_1, window_bounds = array<i64: 128, 32>}, {pipeline_mode = #tpu.pipeline_mode<synchronous>, transform_indices = @transform_2, window_bounds = array<i64: 576, 128>}, {transform_indices = @transform_3, window_bounds = array<i64: 128, 128>}]} {
    %c568 = arith.constant 568 : index
    %c0 = arith.constant 0 : index
    %0 = vector.load %arg3[%c568, %c0] : memref<576x128xf32, #tpu.memory_space<vmem>>, vector<8x128xf32>
    %c0_0 = arith.constant 0 : index
    %c0_1 = arith.constant 0 : index
    %1 = vector.load %arg1[%c0_0, %c0_1] : memref<128x24xf32, #tpu.memory_space<vmem>>, vector<128x24xf32>
    %c0_2 = arith.constant 0 : index
    %c0_3 = arith.constant 0 : index
    %2 = vector.load %arg3[%c0_2, %c0_3] : memref<576x128xf32, #tpu.memory_space<vmem>>, vector<24x128xf32>
    %cst = arith.constant dense<0.000000e+00> : vector<128x128xf32>
    %3 = tpu.matmul %1, %2, %cst {dimension_numbers = #tpu.dot_dimension_numbers<[1], [0], [0], [1], [0, 0, 1, 1], [], []>} : vector<128x24xf32>, vector<24x128xf32>, vector<128x128xf32> -> vector<128x128xf32>
    %c0_4 = arith.constant 0 : index
    %c0_5 = arith.constant 0 : index
    %4 = vector.load %arg2[%c0_4, %c0_5] : memref<128x32xf32, #tpu.memory_space<vmem>>, vector<128x32xf32>
    %c24 = arith.constant 24 : index
    %c0_6 = arith.constant 0 : index
    %5 = vector.load %arg3[%c24, %c0_6] : memref<576x128xf32, #tpu.memory_space<vmem>>, vector<32x128xf32>
    %cst_7 = arith.constant dense<0.000000e+00> : vector<128x128xf32>
    %6 = tpu.matmul %4, %5, %cst_7 {dimension_numbers = #tpu.dot_dimension_numbers<[1], [0], [0], [1], [0, 0, 1, 1], [], []>} : vector<128x32xf32>, vector<32x128xf32>, vector<128x128xf32> -> vector<128x128xf32>
    %7 = arith.addf %3, %6 : vector<128x128xf32>
    %8 = vector.extract_strided_slice %0 {offsets = [0, 0], sizes = [1, 128], strides = [1, 1]} : vector<8x128xf32> to vector<1x128xf32>
    %9 = vector.broadcast %8 : vector<1x128xf32> to vector<128x128xf32>
    %10 = arith.addf %7, %9 : vector<128x128xf32>
    %cst_8 = arith.constant 0.000000e+00 : f32
    %11 = vector.broadcast %cst_8 : f32 to vector<128x128xf32>
    %12 = arith.maximumf %10, %11 : vector<128x128xf32>
    %c56 = arith.constant 56 : index
    %c0_9 = arith.constant 0 : index
    %13 = vector.load %arg3[%c56, %c0_9] : memref<576x128xf32, #tpu.memory_space<vmem>>, vector<128x128xf32>
    %cst_10 = arith.constant dense<0.000000e+00> : vector<128x128xf32>
    %14 = tpu.matmul %12, %13, %cst_10 {dimension_numbers = #tpu.dot_dimension_numbers<[1], [0], [0], [1], [0, 0, 1, 1], [], []>} : vector<128x128xf32>, vector<128x128xf32>, vector<128x128xf32> -> vector<128x128xf32>
    %15 = vector.extract_strided_slice %0 {offsets = [1, 0], sizes = [1, 128], strides = [1, 1]} : vector<8x128xf32> to vector<1x128xf32>
    %16 = vector.broadcast %15 : vector<1x128xf32> to vector<128x128xf32>
    %17 = arith.addf %14, %16 : vector<128x128xf32>
    %cst_11 = arith.constant 0.000000e+00 : f32
    %18 = vector.broadcast %cst_11 : f32 to vector<128x128xf32>
    %19 = arith.maximumf %17, %18 : vector<128x128xf32>
    %c184 = arith.constant 184 : index
    %c0_12 = arith.constant 0 : index
    %20 = vector.load %arg3[%c184, %c0_12] : memref<576x128xf32, #tpu.memory_space<vmem>>, vector<128x128xf32>
    %cst_13 = arith.constant dense<0.000000e+00> : vector<128x128xf32>
    %21 = tpu.matmul %19, %20, %cst_13 {dimension_numbers = #tpu.dot_dimension_numbers<[1], [0], [0], [1], [0, 0, 1, 1], [], []>} : vector<128x128xf32>, vector<128x128xf32>, vector<128x128xf32> -> vector<128x128xf32>
    %22 = vector.extract_strided_slice %0 {offsets = [2, 0], sizes = [1, 128], strides = [1, 1]} : vector<8x128xf32> to vector<1x128xf32>
    %23 = vector.broadcast %22 : vector<1x128xf32> to vector<128x128xf32>
    %24 = arith.addf %21, %23 : vector<128x128xf32>
    %cst_14 = arith.constant 0.000000e+00 : f32
    %25 = vector.broadcast %cst_14 : f32 to vector<128x128xf32>
    %26 = arith.maximumf %24, %25 : vector<128x128xf32>
    %c312 = arith.constant 312 : index
    %c0_15 = arith.constant 0 : index
    %27 = vector.load %arg3[%c312, %c0_15] : memref<576x128xf32, #tpu.memory_space<vmem>>, vector<128x128xf32>
    %cst_16 = arith.constant dense<0.000000e+00> : vector<128x128xf32>
    %28 = tpu.matmul %26, %27, %cst_16 {dimension_numbers = #tpu.dot_dimension_numbers<[1], [0], [0], [1], [0, 0, 1, 1], [], []>} : vector<128x128xf32>, vector<128x128xf32>, vector<128x128xf32> -> vector<128x128xf32>
    %29 = vector.extract_strided_slice %0 {offsets = [3, 0], sizes = [1, 128], strides = [1, 1]} : vector<8x128xf32> to vector<1x128xf32>
    %30 = vector.broadcast %29 : vector<1x128xf32> to vector<128x128xf32>
    %31 = arith.addf %28, %30 : vector<128x128xf32>
    %cst_17 = arith.constant 0.000000e+00 : f32
    %32 = vector.broadcast %cst_17 : f32 to vector<128x128xf32>
    %33 = arith.maximumf %31, %32 : vector<128x128xf32>
    %c440 = arith.constant 440 : index
    %c0_18 = arith.constant 0 : index
    %34 = vector.load %arg3[%c440, %c0_18] : memref<576x128xf32, #tpu.memory_space<vmem>>, vector<128x128xf32>
    %cst_19 = arith.constant dense<0.000000e+00> : vector<128x128xf32>
    %35 = tpu.matmul %33, %34, %cst_19 {dimension_numbers = #tpu.dot_dimension_numbers<[1], [0], [0], [1], [0, 0, 1, 1], [], []>} : vector<128x128xf32>, vector<128x128xf32>, vector<128x128xf32> -> vector<128x128xf32>
    %36 = vector.extract_strided_slice %0 {offsets = [4, 0], sizes = [1, 128], strides = [1, 1]} : vector<8x128xf32> to vector<1x128xf32>
    %37 = vector.broadcast %36 : vector<1x128xf32> to vector<128x128xf32>
    %38 = arith.addf %35, %37 : vector<128x128xf32>
    %39 = tpu.iota {dimensions = array<i32: 1>} : vector<128x128xi32>
    %c16_i32 = arith.constant 16 : i32
    %40 = vector.broadcast %c16_i32 : i32 to vector<128x128xi32>
    %41 = arith.cmpi sge, %39, %40 : vector<128x128xi32>
    %c32_i32 = arith.constant 32 : i32
    %42 = vector.broadcast %c32_i32 : i32 to vector<128x128xi32>
    %43 = arith.cmpi slt, %39, %42 : vector<128x128xi32>
    %44 = arith.andi %41, %43 : vector<128x128xi1>
    %cst_20 = arith.constant -2.000000e+00 : f32
    %cst_21 = arith.constant 2.000000e+00 : f32
    %45 = vector.broadcast %cst_20 : f32 to vector<128x128xf32>
    %46 = arith.maximumf %45, %38 : vector<128x128xf32>
    %47 = vector.broadcast %cst_21 : f32 to vector<128x128xf32>
    %48 = arith.minimumf %47, %46 : vector<128x128xf32>
    %49 = math.exp %48 : vector<128x128xf32>
    %50 = arith.select %44, %49, %38 : vector<128x128xi1>, vector<128x128xf32>
    %c0_22 = arith.constant 0 : index
    %c0_23 = arith.constant 0 : index
    %51 = vector.load %arg4[%c0_22, %c0_23] : memref<128x128xf32, #tpu.memory_space<vmem>>, vector<128x128xf32>
    tpu.vector_store %arg4[%c0_22, %c0_23], %50 {strides = array<i32>} : memref<128x128xf32, #tpu.memory_space<vmem>>, vector<128x128xf32>,
    return
  }
  func.func @transform_0(%arg0: i32) -> (i32, i32) {
    %c0_i32 = arith.constant 0 : i32
    %c0_i32_0 = arith.constant 0 : i32
    return %arg0, %c0_i32 : i32, i32
  }
  func.func @transform_1(%arg0: i32) -> (i32, i32) {
    %c0_i32 = arith.constant 0 : i32
    %c0_i32_0 = arith.constant 0 : i32
    return %arg0, %c0_i32 : i32, i32
  }
  func.func @transform_2(%arg0: i32) -> (i32, i32) {
    %c0_i32 = arith.constant 0 : i32
    %c0_i32_0 = arith.constant 0 : i32
    %c0_i32_1 = arith.constant 0 : i32
    return %c0_i32, %c0_i32_0 : i32, i32
  }
  func.func @transform_3(%arg0: i32) -> (i32, i32) {
    %c0_i32 = arith.constant 0 : i32
    %c0_i32_0 = arith.constant 0 : i32
    return %arg0, %c0_i32 : i32, i32
  }
}

</mosaic_0001>

<llo_original>
// kernel: tpu_custom_call.1
$region0: #{tpu_custom_call.1}
  #allocation0 [shape = 'u32[]', space=smem, size = 0x4, offset = 0x4, fixed_abs, tag = 'smem constant byte address 0x4 - core index']
  #allocation1 [shape = 'u32[72,128]{1,0:T(1,128)}', space=vmem, size = 0x9000, scoped, tag = 'internal scratch']
  %s0 = inlined_call_operand.vmem [shape: f32[256,24], index: 0, kind: input, shape index: {}]
  %s1 = inlined_call_operand.vmem [shape: f32[256,32], index: 1, kind: input, shape index: {}]
  %s2 = inlined_call_operand.hbm [shape: f32[576,128], index: 2, kind: input, shape index: {}]
  %s3 = inlined_call_operand.hbm [shape: f32[256,128], index: 3, kind: output, shape index: {}]
  %s4 = sld [smem:[#allocation0]]
  $region49: #{tpu_custom_call.1} parent=0
    _
  %s6 = ssub.s32 1, %s4
  %s7 = scalar_select 0, %s6, %s4
  $region1: #{tpu_custom_call.1} parent=0
    #allocation2 [shape = 'u8[294912]{0}', space=vmem, size = 0x48000, scoped, tag = 'input window, operand 2, single buffered']
    #allocation3 [shape = 's32[2]{0}', space=sflag, size = 0x8, scoped, tag = 'scoped memory for tpu_custom_call.1']
    #allocation4 [shape = 's32[2]{0}', space=sflag, size = 0x8, scoped, tag = 'scoped memory for tpu_custom_call.1']
    #allocation5 [shape = 'u8[131072]{0}', space=vmem, size = 0x20000, scoped, tag = 'output window, operand 0']
    %8 = vsyncpa [#allocation3], 0
    %9 = vsyncpa [#allocation4], 0
    %s10 = scalar_lea.sflag [#allocation4], 1
    %11 = vsyncpa %s10, 0
    loop: start=0, step=1, limit=4
    $region2: #{tpu_custom_call.1} parent=1 // loop_pre_header
      _
    $region3: #{tpu_custom_call.1} parent=1 // loop_header
      %s13 = sphi 0, %s17
      %p14 = scmp.ge.s32.totalorder %s13, 4
      %s23 = sphi 0, %s25
      %s26 = sphi 0, %s23
      %s27 = sphi 0, %s26
      %s43 = sphi 0, %s27
      %s49 = sphi 0, %s51
      %s52 = sphi 0, %s49
      %s53 = sphi 0, %s52
      %s69 = sphi 0, %s53
      %s73 = sphi 0, %s73
      %s75 = sphi 0, %s73
      %s76 = sphi 0, %s75
      %s90 = sphi 0, %s76
      %s96 = sphi 0, %s98
      %s99 = sphi 0, %s96
      %s100 = sphi 0, %s99
      %s116 = sphi 0, %s100
    $region4: #{tpu_custom_call.1} parent=1 // loop_header_branch
      %16 = sbr.rel (%p14) target = $region8
    $region5: #{tpu_custom_call.1} parent=1 // loop_body
      %s18 = ssub.s32 %s13, 1
      %s19 = ssub.s32 %s13, 2
      %s20 = sadd.s32 %s13, 1
      %s21 = ssub.s32 %s13, %s20
      %p22 = scmp.eq.s32.totalorder %s21, 0
      %s24 = sadd.s32 %s23, 1
      %s25 = scalar_select %p22, %s23, %s24
      %p28 = pneg %p22
      %p29 = scmp.eq.s32.totalorder %s13, 1
      %p30 = por %p28, %p29
      %p31 = scmp.ne.s32.totalorder %s23, %s26
      %p32 = scmp.eq.s32.totalorder %s13, 0
      %p33 = por %p31, %p32
      %p34 = scmp.ne.s32.totalorder %s23, %s26
      %p35 = scmp.eq.s32.totalorder %s18, 1
      %p36 = por %p34, %p35
      %p37 = scmp.ne.s32.totalorder %s26, %s27
      %p38 = scmp.eq.s32.totalorder %s18, 0
      %p39 = por %p37, %p38
      %p40 = scmp.ne.s32.totalorder %s26, %s27
      %p41 = scmp.eq.s32.totalorder %s19, 1
      %p42 = por %p40, %p41
      %p44 = scmp.ne.s32.totalorder %s27, %s43
      %p45 = scmp.eq.s32.totalorder %s19, 0
      %p46 = por %p44, %p45
      %s47 = ssub.s32 %s13, %s20
      %p48 = scmp.eq.s32.totalorder %s47, 0
      %s50 = sadd.s32 %s49, 1
      %s51 = scalar_select %p48, %s49, %s50
      %p54 = pneg %p48
      %p55 = scmp.eq.s32.totalorder %s13, 1
      %p56 = por %p54, %p55
      %p57 = scmp.ne.s32.totalorder %s49, %s52
      %p58 = scmp.eq.s32.totalorder %s13, 0
      %p59 = por %p57, %p58
      %p60 = scmp.ne.s32.totalorder %s49, %s52
      %p61 = scmp.eq.s32.totalorder %s18, 1
      %p62 = por %p60, %p61
      %p63 = scmp.ne.s32.totalorder %s52, %s53
      %p64 = scmp.eq.s32.totalorder %s18, 0
      %p65 = por %p63, %p64
      %p66 = scmp.ne.s32.totalorder %s52, %s53
      %p67 = scmp.eq.s32.totalorder %s19, 1
      %p68 = por %p66, %p67
      %p70 = scmp.ne.s32.totalorder %s53, %s69
      %p71 = scmp.eq.s32.totalorder %s19, 0
      %p72 = por %p70, %p71
      %s74 = sadd.s32 %s73, 1
      %p77 = scmp.eq.s32.totalorder %s13, 1
      %p78 = scmp.ne.s32.totalorder %s73, %s75
      %p79 = scmp.eq.s32.totalorder %s13, 0
      %p80 = por %p78, %p79
      %p81 = scmp.ne.s32.totalorder %s73, %s75
      %p82 = scmp.eq.s32.totalorder %s18, 1
      %p83 = por %p81, %p82
      %p84 = scmp.ne.s32.totalorder %s75, %s76
      %p85 = scmp.eq.s32.totalorder %s18, 0
      %p86 = por %p84, %p85
      %p87 = scmp.ne.s32.totalorder %s75, %s76
      %p88 = scmp.eq.s32.totalorder %s19, 1
      %p89 = por %p87, %p88
      %p91 = scmp.ne.s32.totalorder %s76, %s90
      %p92 = scmp.eq.s32.totalorder %s19, 0
      %p93 = por %p91, %p92
      %s94 = ssub.s32 %s13, %s20
      %p95 = scmp.eq.s32.totalorder %s94, 0
      %s97 = sadd.s32 %s96, 1
      %s98 = scalar_select %p95, %s96, %s97
      %p101 = pneg %p95
      %p102 = scmp.eq.s32.totalorder %s13, 1
      %p103 = por %p101, %p102
      %p104 = scmp.ne.s32.totalorder %s96, %s99
      %p105 = scmp.eq.s32.totalorder %s13, 0
      %p106 = por %p104, %p105
      %p107 = scmp.ne.s32.totalorder %s96, %s99
      %p108 = scmp.eq.s32.totalorder %s18, 1
      %p109 = por %p107, %p108
      %p110 = scmp.ne.s32.totalorder %s99, %s100
      %p111 = scmp.eq.s32.totalorder %s18, 0
      %p112 = por %p110, %p111
      %p113 = scmp.ne.s32.totalorder %s99, %s100
      %p114 = scmp.eq.s32.totalorder %s19, 1
      %p115 = por %p113, %p114
      %p117 = scmp.ne.s32.totalorder %s100, %s116
      %p118 = scmp.eq.s32.totalorder %s19, 0
      %p119 = por %p117, %p118
      %p120 = scmp.le.s32.totalorder 1, %s13
      %p121 = scmp.lt.s32.totalorder %s13, 3
      %p122 = pnand %p120, %p121
      %p123 = pneg %p122
      // Predicated region
      $region9: #{tpu_custom_call.1} parent=5 // pred_check
        _
      $region10: #{tpu_custom_call.1} parent=5 // pred_check_branch
        %125 = sbr.rel (%p122) target = $region12
      $region11: #{tpu_custom_call.1} parent=5 // pred_region
        %s126 = ssub.s32 %s13, 1
        // Predicated region
        $region13: #{tpu_custom_call.1} parent=11 // pred_check
          %p127 = pneg %p86
        $region14: #{tpu_custom_call.1} parent=11 // pred_check_branch
          %129 = sbr.rel (%p127) target = $region16
        $region15: #{tpu_custom_call.1} parent=11 // pred_region
          %131 = vsyncadd [#allocation3], 0
          %s132 = sshll.u32 %s2, 4
          %s133 = int_to_ptr.hbm [resolvable:$true] %s132
          %s134 = sshll.u32 [#allocation2], 4
          %s135 = int_to_ptr.vmem [resolvable:$true] %s134
          %140 = dma.hbm_to_vmem [thread:$0]  %s133, 9216, %s135, [#allocation3], 128, 128, 8
        $region16: #{tpu_custom_call.1} parent=11 // pred_fallthru
          _
      $region12: #{tpu_custom_call.1} parent=5 // pred_fallthru
        _
      %p141 = scmp.lt.s32.totalorder %s13, 2
      // Predicated region
      $region17: #{tpu_custom_call.1} parent=5 // pred_check
        %p142 = pneg %p141
      $region18: #{tpu_custom_call.1} parent=5 // pred_check_branch
        %144 = sbr.rel (%p142) target = $region20
      $region19: #{tpu_custom_call.1} parent=5 // pred_region
        // Predicated region
        $region21: #{tpu_custom_call.1} parent=19 // pred_check
          %p145 = pneg %p33
        $region22: #{tpu_custom_call.1} parent=19 // pred_check_branch
          %147 = sbr.rel (%p145) target = $region24
        $region23: #{tpu_custom_call.1} parent=19 // pred_region
          %s148 = smul.u32 16, %s13
          %p149 = scmp.lt.s32.totalorder %s148, 31
          %s150 = scalar_select %p149, %s148, 31
          %s151 = smul.addr %s150, 8
          %s152 = scalar_lea.vmem %s0, %s151
          %s153 = smul.u32 16, %s13
        $region24: #{tpu_custom_call.1} parent=19 // pred_fallthru
          _
        // Predicated region
        $region25: #{tpu_custom_call.1} parent=19 // pred_check
          %p154 = pneg %p59
        $region26: #{tpu_custom_call.1} parent=19 // pred_check_branch
          %156 = sbr.rel (%p154) target = $region28
        $region27: #{tpu_custom_call.1} parent=19 // pred_region
          %s157 = smul.u32 16, %s13
          %p158 = scmp.lt.s32.totalorder %s157, 31
          %s159 = scalar_select %p158, %s157, 31
          %s160 = smul.addr %s159, 8
          %s161 = scalar_lea.vmem %s1, %s160
          %s162 = smul.u32 16, %s13
        $region28: #{tpu_custom_call.1} parent=19 // pred_fallthru
          _
      $region20: #{tpu_custom_call.1} parent=5 // pred_fallthru
        _
      %p163 = scmp.le.s32.totalorder 1, %s13
      %p164 = scmp.lt.s32.totalorder %s13, 3
      %p165 = pnand %p163, %p164
      %p166 = pneg %p165
      // Predicated region
      $region29: #{tpu_custom_call.1} parent=5 // pred_check
        _
      $region30: #{tpu_custom_call.1} parent=5 // pred_check_branch
        %168 = sbr.rel (%p165) target = $region32
      $region31: #{tpu_custom_call.1} parent=5 // pred_region
        %s169 = ssub.s32 %s13, 1
        // Predicated region
        $region33: #{tpu_custom_call.1} parent=31 // pred_check
          %p170 = pneg %p86
        $region34: #{tpu_custom_call.1} parent=31 // pred_check_branch
          %172 = sbr.rel (%p170) target = $region36
        $region35: #{tpu_custom_call.1} parent=31 // pred_region
          %174 = dma.done [#allocation3], 9216
        $region36: #{tpu_custom_call.1} parent=31 // pred_fallthru
          _
        %s175 = smul.u32 16, %s18
        %p176 = scmp.lt.s32.totalorder %s175, 31
        %s177 = scalar_select %p176, %s175, 31
        %s178 = smul.addr %s177, 8
        %s179 = scalar_lea.vmem %s0, %s178
        %p180 = pneg %p39
        %p181 = pneg %p36
        %s182 = smul.u32 16, %s18
        %p183 = scmp.lt.s32.totalorder %s182, 31
        %s184 = scalar_select %p183, %s182, 31
        %s185 = smul.addr %s184, 8
        %s186 = scalar_lea.vmem %s1, %s185
        %p187 = pneg %p65
        %p188 = pneg %p62
        %p189 = pneg %p86
        %p190 = pneg %p83
        %p191 = pneg %p112
        %p192 = pneg %p109
        %s193 = sand.u32 %s99, 1
        %s194 = scalar_lea.sflag [#allocation4], %s193
        %s195 = sand.u32 %s99, 1
        %s196 = smul.addr %s195, 128
        %s197 = scalar_lea.vmem [#allocation5], %s196
        %s198 = smul.u32 16, %s18
        %p199 = scmp.lt.s32.totalorder %s198, 31
        %s200 = scalar_select %p199, %s198, 31
        %s201 = smul.addr %s200, 8
        %s202 = scalar_lea.vmem %s0, %s201
        %s203 = smul.u32 16, %s18
        %s204 = smul.u32 16, %s18
        %p205 = scmp.lt.s32.totalorder %s204, 31
        %s206 = scalar_select %p205, %s204, 31
        %s207 = smul.addr %s206, 8
        %s208 = scalar_lea.vmem %s1, %s207
        %s209 = smul.u32 16, %s18
        %s210 = smul.u32 16, %s18
        %v211 = vld [vmem:[#allocation2 + $0x238] sm:$0xff]
        %v212 = vld [vmem:[%s202] sm:$0xff]
        %v213 = vld [vmem:[%s202 + $0x8] sm:$0xff]
        %v214 = vld [vmem:[%s202 + $0x10] sm:$0xff]
        %v215 = vld [vmem:[%s202 + $0x18] sm:$0xff]
        %v216 = vld [vmem:[%s202 + $0x20] sm:$0xff]
        %v217 = vld [vmem:[%s202 + $0x28] sm:$0xff]
        %v218 = vld [vmem:[%s202 + $0x30] sm:$0xff]
        %v219 = vld [vmem:[%s202 + $0x38] sm:$0xff]
        %v220 = vld [vmem:[%s202 + $0x40] sm:$0xff]
        %v221 = vld [vmem:[%s202 + $0x48] sm:$0xff]
        %v222 = vld [vmem:[%s202 + $0x50] sm:$0xff]
        %v223 = vld [vmem:[%s202 + $0x58] sm:$0xff]
        %v224 = vld [vmem:[%s202 + $0x60] sm:$0xff]
        %v225 = vld [vmem:[%s202 + $0x68] sm:$0xff]
        %v226 = vld [vmem:[%s202 + $0x70] sm:$0xff]
        %v227 = vld [vmem:[%s202 + $0x78] sm:$0xff]
        %v228 = vld [vmem:[#allocation2] sm:$0xff]
        %v229 = vld [vmem:[#allocation2 + $0x8] sm:$0xff]
        %v230 = vld [vmem:[#allocation2 + $0x10] sm:$0xff]
        %v231 = vld [vmem:[%s208] sm:$0xff]
        %v232 = vld [vmem:[%s208 + $0x8] sm:$0xff]
        %v233 = vld [vmem:[%s208 + $0x10] sm:$0xff]
        %v234 = vld [vmem:[%s208 + $0x18] sm:$0xff]
        %v235 = vld [vmem:[%s208 + $0x20] sm:$0xff]
        %v236 = vld [vmem:[%s208 + $0x28] sm:$0xff]
        %v237 = vld [vmem:[%s208 + $0x30] sm:$0xff]
        %v238 = vld [vmem:[%s208 + $0x38] sm:$0xff]
        %v239 = vld [vmem:[%s208 + $0x40] sm:$0xff]
        %v240 = vld [vmem:[%s208 + $0x48] sm:$0xff]
        %v241 = vld [vmem:[%s208 + $0x50] sm:$0xff]
        %v242 = vld [vmem:[%s208 + $0x58] sm:$0xff]
        %v243 = vld [vmem:[%s208 + $0x60] sm:$0xff]
        %v244 = vld [vmem:[%s208 + $0x68] sm:$0xff]
        %v245 = vld [vmem:[%s208 + $0x70] sm:$0xff]
        %v246 = vld [vmem:[%s208 + $0x78] sm:$0xff]
        %v247 = vld [vmem:[#allocation2 + $0x18] sm:$0xff]
        %v248 = vld [vmem:[#allocation2 + $0x20] sm:$0xff]
        %v249 = vld [vmem:[#allocation2 + $0x28] sm:$0xff]
        %v250 = vld [vmem:[#allocation2 + $0x30] sm:$0xff]
        %vm251 = vcmask 261120
        %v253 = vsel %vm251, %v231, 0
        %v256 = vsel %vm251, %v232, 0
        %v259 = vsel %vm251, %v233, 0
        %v262 = vsel %vm251, %v234, 0
        %v265 = vsel %vm251, %v235, 0
        %v268 = vsel %vm251, %v236, 0
        %v271 = vsel %vm251, %v237, 0
        %v274 = vsel %vm251, %v238, 0
        %v277 = vsel %vm251, %v239, 0
        %v280 = vsel %vm251, %v240, 0
        %v283 = vsel %vm251, %v241, 0
        %v286 = vsel %vm251, %v242, 0
        %v289 = vsel %vm251, %v243, 0
        %v292 = vsel %vm251, %v244, 0
        %v295 = vsel %vm251, %v245, 0
        %v298 = vsel %vm251, %v246, 0
        %300 = vmatpush.msra.mxu0 0.0
        %301 = vmatpush.msra.mxu0 0.0
        %302 = vmatpush.msra.mxu0 0.0
        %303 = vmatpush.msra.mxu0 0.0
        %304 = vmatpush.msra.mxu0 0.0
        %305 = vmatpush.msra.mxu0 0.0
        %306 = vmatpush.msra.mxu0 0.0
        %307 = vmatpush.msra.mxu0 0.0
        %308 = vmatpush.msra.mxu0 0.0
        %309 = vmatpush.msra.mxu0 0.0
        %310 = vmatpush.msra.mxu0 0.0
        %311 = vmatpush.msra.mxu0 0.0
        %312 = vmatpush.msra.mxu0 %v250
        %313 = vmatpush.msra.mxu0 %v249
        %314 = vmatpush.msra.mxu0 %v248
        %315 = vmatpush.msra.mxu0 %v247
        %316 = vmatmul.f32.gmra.mxu0 %v253
        %v317 = vpop.f32.mrf.mxu0
        %v318 = vadd.f32 0.0, %v317
        %319 = vmatmul.f32.gmra.mxu0 %v256
        %v320 = vpop.f32.mrf.mxu0
        %v321 = vadd.f32 0.0, %v320
        %322 = vmatmul.f32.gmra.mxu0 %v259
        %v323 = vpop.f32.mrf.mxu0
        %v324 = vadd.f32 0.0, %v323
        %325 = vmatmul.f32.gmra.mxu0 %v262
        %v326 = vpop.f32.mrf.mxu0
        %v327 = vadd.f32 0.0, %v326
        %328 = vmatmul.f32.gmra.mxu0 %v265
        %v329 = vpop.f32.mrf.mxu0
        %v330 = vadd.f32 0.0, %v329
        %331 = vmatmul.f32.gmra.mxu0 %v268
        %v332 = vpop.f32.mrf.mxu0
        %v333 = vadd.f32 0.0, %v332
        %334 = vmatmul.f32.gmra.mxu0 %v271
        %v335 = vpop.f32.mrf.mxu0
        %v336 = vadd.f32 0.0, %v335
        %337 = vmatmul.f32.gmra.mxu0 %v274
        %v338 = vpop.f32.mrf.mxu0
        %v339 = vadd.f32 0.0, %v338
        %340 = vmatmul.f32.gmra.mxu0 %v277
        %v341 = vpop.f32.mrf.mxu0
        %v342 = vadd.f32 0.0, %v341
        %343 = vmatmul.f32.gmra.mxu0 %v280
        %v344 = vpop.f32.mrf.mxu0
        %v345 = vadd.f32 0.0, %v344
        %346 = vmatmul.f32.gmra.mxu0 %v283
        %v347 = vpop.f32.mrf.mxu0
        %v348 = vadd.f32 0.0, %v347
        %349 = vmatmul.f32.gmra.mxu0 %v286
        %v350 = vpop.f32.mrf.mxu0
        %v351 = vadd.f32 0.0, %v350
        %352 = vmatmul.f32.gmra.mxu0 %v289
        %v353 = vpop.f32.mrf.mxu0
        %v354 = vadd.f32 0.0, %v353
        %355 = vmatmul.f32.gmra.mxu0 %v292
        %v356 = vpop.f32.mrf.mxu0
        %v357 = vadd.f32 0.0, %v356
        %358 = vmatmul.f32.gmra.mxu0 %v295
        %v359 = vpop.f32.mrf.mxu0
        %v360 = vadd.f32 0.0, %v359
        %361 = vmatmul.f32.gmra.mxu0 %v298
        %v362 = vpop.f32.mrf.mxu0
        %v363 = vadd.f32 0.0, %v362
        %364 = vdwg.mxu0
        %vm365 = vcmask 195584
        %v367 = vsel %vm365, %v212, 0
        %v370 = vsel %vm365, %v213, 0
        %v373 = vsel %vm365, %v214, 0
        %v376 = vsel %vm365, %v215, 0
        %v379 = vsel %vm365, %v216, 0
        %v382 = vsel %vm365, %v217, 0
        %v385 = vsel %vm365, %v218, 0
        %v388 = vsel %vm365, %v219, 0
        %v391 = vsel %vm365, %v220, 0
        %v394 = vsel %vm365, %v221, 0
        %v397 = vsel %vm365, %v222, 0
        %v400 = vsel %vm365, %v223, 0
        %v403 = vsel %vm365, %v224, 0
        %v406 = vsel %vm365, %v225, 0
        %v409 = vsel %vm365, %v226, 0
        %v412 = vsel %vm365, %v227, 0
        %414 = vmatpush.msra.mxu0 0.0
        %415 = vmatpush.msra.mxu0 0.0
        %416 = vmatpush.msra.mxu0 0.0
        %417 = vmatpush.msra.mxu0 0.0
        %418 = vmatpush.msra.mxu0 0.0
        %419 = vmatpush.msra.mxu0 0.0
        %420 = vmatpush.msra.mxu0 0.0
        %421 = vmatpush.msra.mxu0 0.0
        %422 = vmatpush.msra.mxu0 0.0
        %423 = vmatpush.msra.mxu0 0.0
        %424 = vmatpush.msra.mxu0 0.0
        %425 = vmatpush.msra.mxu0 0.0
        %426 = vmatpush.msra.mxu0 0.0
        %427 = vmatpush.msra.mxu0 %v230
        %428 = vmatpush.msra.mxu0 %v229
        %429 = vmatpush.msra.mxu0 %v228
        %430 = vmatmul.f32.gmra.mxu0 %v367
        %v431 = vpop.f32.mrf.mxu0
        %v432 = vadd.f32 %v318, %v431
        %433 = vmatmul.f32.gmra.mxu0 %v370
        %v434 = vpop.f32.mrf.mxu0
        %v435 = vadd.f32 %v321, %v434
        %436 = vmatmul.f32.gmra.mxu0 %v373
        %v437 = vpop.f32.mrf.mxu0
        %v438 = vadd.f32 %v324, %v437
        %439 = vmatmul.f32.gmra.mxu0 %v376
        %v440 = vpop.f32.mrf.mxu0
        %v441 = vadd.f32 %v327, %v440
        %442 = vmatmul.f32.gmra.mxu0 %v379
        %v443 = vpop.f32.mrf.mxu0
        %v444 = vadd.f32 %v330, %v443
        %445 = vmatmul.f32.gmra.mxu0 %v382
        %v446 = vpop.f32.mrf.mxu0
        %v447 = vadd.f32 %v333, %v446
        %448 = vmatmul.f32.gmra.mxu0 %v385
        %v449 = vpop.f32.mrf.mxu0
        %v450 = vadd.f32 %v336, %v449
        %451 = vmatmul.f32.gmra.mxu0 %v388
        %v452 = vpop.f32.mrf.mxu0
        %v453 = vadd.f32 %v339, %v452
        %454 = vmatmul.f32.gmra.mxu0 %v391
        %v455 = vpop.f32.mrf.mxu0
        %v456 = vadd.f32 %v342, %v455
        %457 = vmatmul.f32.gmra.mxu0 %v394
        %v458 = vpop.f32.mrf.mxu0
        %v459 = vadd.f32 %v345, %v458
        %460 = vmatmul.f32.gmra.mxu0 %v397
        %v461 = vpop.f32.mrf.mxu0
        %v462 = vadd.f32 %v348, %v461
        %463 = vmatmul.f32.gmra.mxu0 %v400
        %v464 = vpop.f32.mrf.mxu0
        %v465 = vadd.f32 %v351, %v464
        %466 = vmatmul.f32.gmra.mxu0 %v403
        %v467 = vpop.f32.mrf.mxu0
        %v468 = vadd.f32 %v354, %v467
        %469 = vmatmul.f32.gmra.mxu0 %v406
        %v470 = vpop.f32.mrf.mxu0
        %v471 = vadd.f32 %v357, %v470
        %472 = vmatmul.f32.gmra.mxu0 %v409
        %v473 = vpop.f32.mrf.mxu0
        %v474 = vadd.f32 %v360, %v473
        %475 = vmatmul.f32.gmra.mxu0 %v412
        %v476 = vpop.f32.mrf.mxu0
        %v477 = vadd.f32 %v363, %v476
        %478 = vdwg.mxu0
        %v479 = vperm.slane %v211, 0
        %v480 = vadd.f32 %v432, %v479
        %v481 = vadd.f32 %v435, %v479
        %v482 = vadd.f32 %v438, %v479
        %v483 = vadd.f32 %v441, %v479
        %v484 = vadd.f32 %v444, %v479
        %v485 = vadd.f32 %v447, %v479
        %v486 = vadd.f32 %v450, %v479
        %v487 = vadd.f32 %v453, %v479
        %v488 = vadd.f32 %v456, %v479
        %v489 = vadd.f32 %v459, %v479
        %v490 = vadd.f32 %v462, %v479
        %v491 = vadd.f32 %v465, %v479
        %v492 = vadd.f32 %v468, %v479
        %v493 = vadd.f32 %v471, %v479
        %v494 = vadd.f32 %v474, %v479
        %v495 = vadd.f32 %v477, %v479
        %v496 = vmax.f32 %v480, 0.0
        %v497 = vmax.f32 %v481, 0.0
        %v498 = vmax.f32 %v482, 0.0
        %v499 = vmax.f32 %v483, 0.0
        %v500 = vmax.f32 %v484, 0.0
        %v501 = vmax.f32 %v485, 0.0
        %v502 = vmax.f32 %v486, 0.0
        %v503 = vmax.f32 %v487, 0.0
        %v504 = vmax.f32 %v488, 0.0
        %v505 = vmax.f32 %v489, 0.0
        %v506 = vmax.f32 %v490, 0.0
        %v507 = vmax.f32 %v491, 0.0
        %v508 = vmax.f32 %v492, 0.0
        %v509 = vmax.f32 %v493, 0.0
        %v510 = vmax.f32 %v494, 0.0
        %v511 = vmax.f32 %v495, 0.0
        %v512 = vld [vmem:[#allocation2 + $0x38] sm:$0xff]
        %v513 = vld [vmem:[#allocation2 + $0x40] sm:$0xff]
        %v514 = vld [vmem:[#allocation2 + $0x48] sm:$0xff]
        %v515 = vld [vmem:[#allocation2 + $0x50] sm:$0xff]
        %v516 = vld [vmem:[#allocation2 + $0x58] sm:$0xff]
        %v517 = vld [vmem:[#allocation2 + $0x60] sm:$0xff]
        %v518 = vld [vmem:[#allocation2 + $0x68] sm:$0xff]
        %v519 = vld [vmem:[#allocation2 + $0x70] sm:$0xff]
        %v520 = vld [vmem:[#allocation2 + $0x78] sm:$0xff]
        %v521 = vld [vmem:[#allocation2 + $0x80] sm:$0xff]
        %v522 = vld [vmem:[#allocation2 + $0x88] sm:$0xff]
        %v523 = vld [vmem:[#allocation2 + $0x90] sm:$0xff]
        %v524 = vld [vmem:[#allocation2 + $0x98] sm:$0xff]
        %v525 = vld [vmem:[#allocation2 + $0xa0] sm:$0xff]
        %v526 = vld [vmem:[#allocation2 + $0xa8] sm:$0xff]
        %v527 = vld [vmem:[#allocation2 + $0xb0] sm:$0xff]
        %v528 = vperm.slane %v211, 1
        %529 = vmatpush.msra.mxu0 %v527
        %530 = vmatpush.msra.mxu0 %v526
        %531 = vmatpush.msra.mxu0 %v525
        %532 = vmatpush.msra.mxu0 %v524
        %533 = vmatpush.msra.mxu0 %v523
        %534 = vmatpush.msra.mxu0 %v522
        %535 = vmatpush.msra.mxu0 %v521
        %536 = vmatpush.msra.mxu0 %v520
        %537 = vmatpush.msra.mxu0 %v519
        %538 = vmatpush.msra.mxu0 %v518
        %539 = vmatpush.msra.mxu0 %v517
        %540 = vmatpush.msra.mxu0 %v516
        %541 = vmatpush.msra.mxu0 %v515
        %542 = vmatpush.msra.mxu0 %v514
        %543 = vmatpush.msra.mxu0 %v513
        %544 = vmatpush.msra.mxu0 %v512
        %545 = vmatmul.f32.gmra.mxu0 %v496
        %v546 = vpop.f32.mrf.mxu0
        %v547 = vadd.f32 %v528, %v546
        %548 = vmatmul.f32.gmra.mxu0 %v497
        %v549 = vpop.f32.mrf.mxu0
        %v550 = vadd.f32 %v528, %v549
        %551 = vmatmul.f32.gmra.mxu0 %v498
        %v552 = vpop.f32.mrf.mxu0
        %v553 = vadd.f32 %v528, %v552
        %554 = vmatmul.f32.gmra.mxu0 %v499
        %v555 = vpop.f32.mrf.mxu0
        %v556 = vadd.f32 %v528, %v555
        %557 = vmatmul.f32.gmra.mxu0 %v500
        %v558 = vpop.f32.mrf.mxu0
        %v559 = vadd.f32 %v528, %v558
        %560 = vmatmul.f32.gmra.mxu0 %v501
        %v561 = vpop.f32.mrf.mxu0
        %v562 = vadd.f32 %v528, %v561
        %563 = vmatmul.f32.gmra.mxu0 %v502
        %v564 = vpop.f32.mrf.mxu0
        %v565 = vadd.f32 %v528, %v564
        %566 = vmatmul.f32.gmra.mxu0 %v503
        %v567 = vpop.f32.mrf.mxu0
        %v568 = vadd.f32 %v528, %v567
        %569 = vmatmul.f32.gmra.mxu0 %v504
        %v570 = vpop.f32.mrf.mxu0
        %v571 = vadd.f32 %v528, %v570
        %572 = vmatmul.f32.gmra.mxu0 %v505
        %v573 = vpop.f32.mrf.mxu0
        %v574 = vadd.f32 %v528, %v573
        %575 = vmatmul.f32.gmra.mxu0 %v506
        %v576 = vpop.f32.mrf.mxu0
        %v577 = vadd.f32 %v528, %v576
        %578 = vmatmul.f32.gmra.mxu0 %v507
        %v579 = vpop.f32.mrf.mxu0
        %v580 = vadd.f32 %v528, %v579
        %581 = vmatmul.f32.gmra.mxu0 %v508
        %v582 = vpop.f32.mrf.mxu0
        %v583 = vadd.f32 %v528, %v582
        %584 = vmatmul.f32.gmra.mxu0 %v509
        %v585 = vpop.f32.mrf.mxu0
        %v586 = vadd.f32 %v528, %v585
        %587 = vmatmul.f32.gmra.mxu0 %v510
        %v588 = vpop.f32.mrf.mxu0
        %v589 = vadd.f32 %v528, %v588
        %590 = vmatmul.f32.gmra.mxu0 %v511
        %v591 = vpop.f32.mrf.mxu0
        %v592 = vadd.f32 %v528, %v591
        %593 = vdwg.mxu0
        %v594 = vmax.f32 %v547, 0.0
        %v595 = vmax.f32 %v550, 0.0
        %v596 = vmax.f32 %v553, 0.0
        %v597 = vmax.f32 %v556, 0.0
        %v598 = vmax.f32 %v559, 0.0
        %v599 = vmax.f32 %v562, 0.0
        %v600 = vmax.f32 %v565, 0.0
        %v601 = vmax.f32 %v568, 0.0
        %v602 = vmax.f32 %v571, 0.0
        %v603 = vmax.f32 %v574, 0.0
        %v604 = vmax.f32 %v577, 0.0
        %v605 = vmax.f32 %v580, 0.0
        %v606 = vmax.f32 %v583, 0.0
        %v607 = vmax.f32 %v586, 0.0
        %v608 = vmax.f32 %v589, 0.0
        %v609 = vmax.f32 %v592, 0.0
        %v610 = vld [vmem:[#allocation2 + $0xb8] sm:$0xff]
        %v611 = vld [vmem:[#allocation2 + $0xc0] sm:$0xff]
        %v612 = vld [vmem:[#allocation2 + $0xc8] sm:$0xff]
        %v613 = vld [vmem:[#allocation2 + $0xd0] sm:$0xff]
        %v614 = vld [vmem:[#allocation2 + $0xd8] sm:$0xff]
        %v615 = vld [vmem:[#allocation2 + $0xe0] sm:$0xff]
        %v616 = vld [vmem:[#allocation2 + $0xe8] sm:$0xff]
        %v617 = vld [vmem:[#allocation2 + $0xf0] sm:$0xff]
        %v618 = vld [vmem:[#allocation2 + $0xf8] sm:$0xff]
        %v619 = vld [vmem:[#allocation2 + $0x100] sm:$0xff]
        %v620 = vld [vmem:[#allocation2 + $0x108] sm:$0xff]
        %v621 = vld [vmem:[#allocation2 + $0x110] sm:$0xff]
        %v622 = vld [vmem:[#allocation2 + $0x118] sm:$0xff]
        %v623 = vld [vmem:[#allocation2 + $0x120] sm:$0xff]
        %v624 = vld [vmem:[#allocation2 + $0x128] sm:$0xff]
        %v625 = vld [vmem:[#allocation2 + $0x130] sm:$0xff]
        %v626 = vperm.slane %v211, 2
        %627 = vmatpush.msra.mxu0 %v625
        %628 = vmatpush.msra.mxu0 %v624
        %629 = vmatpush.msra.mxu0 %v623
        %630 = vmatpush.msra.mxu0 %v622
        %631 = vmatpush.msra.mxu0 %v621
        %632 = vmatpush.msra.mxu0 %v620
        %633 = vmatpush.msra.mxu0 %v619
        %634 = vmatpush.msra.mxu0 %v618
        %635 = vmatpush.msra.mxu0 %v617
        %636 = vmatpush.msra.mxu0 %v616
        %637 = vmatpush.msra.mxu0 %v615
        %638 = vmatpush.msra.mxu0 %v614
        %639 = vmatpush.msra.mxu0 %v613
        %640 = vmatpush.msra.mxu0 %v612
        %641 = vmatpush.msra.mxu0 %v611
        %642 = vmatpush.msra.mxu0 %v610
        %643 = vmatmul.f32.gmra.mxu0 %v594
        %v644 = vpop.f32.mrf.mxu0
        %v645 = vadd.f32 %v626, %v644
        %646 = vmatmul.f32.gmra.mxu0 %v595
        %v647 = vpop.f32.mrf.mxu0
        %v648 = vadd.f32 %v626, %v647
        %649 = vmatmul.f32.gmra.mxu0 %v596
        %v650 = vpop.f32.mrf.mxu0
        %v651 = vadd.f32 %v626, %v650
        %652 = vmatmul.f32.gmra.mxu0 %v597
        %v653 = vpop.f32.mrf.mxu0
        %v654 = vadd.f32 %v626, %v653
        %655 = vmatmul.f32.gmra.mxu0 %v598
        %v656 = vpop.f32.mrf.mxu0
        %v657 = vadd.f32 %v626, %v656
        %658 = vmatmul.f32.gmra.mxu0 %v599
        %v659 = vpop.f32.mrf.mxu0
        %v660 = vadd.f32 %v626, %v659
        %661 = vmatmul.f32.gmra.mxu0 %v600
        %v662 = vpop.f32.mrf.mxu0
        %v663 = vadd.f32 %v626, %v662
        %664 = vmatmul.f32.gmra.mxu0 %v601
        %v665 = vpop.f32.mrf.mxu0
        %v666 = vadd.f32 %v626, %v665
        %667 = vmatmul.f32.gmra.mxu0 %v602
        %v668 = vpop.f32.mrf.mxu0
        %v669 = vadd.f32 %v626, %v668
        %670 = vmatmul.f32.gmra.mxu0 %v603
        %v671 = vpop.f32.mrf.mxu0
        %v672 = vadd.f32 %v626, %v671
        %673 = vmatmul.f32.gmra.mxu0 %v604
        %v674 = vpop.f32.mrf.mxu0
        %v675 = vadd.f32 %v626, %v674
        %676 = vmatmul.f32.gmra.mxu0 %v605
        %v677 = vpop.f32.mrf.mxu0
        %v678 = vadd.f32 %v626, %v677
        %679 = vmatmul.f32.gmra.mxu0 %v606
        %v680 = vpop.f32.mrf.mxu0
        %v681 = vadd.f32 %v626, %v680
        %682 = vmatmul.f32.gmra.mxu0 %v607
        %v683 = vpop.f32.mrf.mxu0
        %v684 = vadd.f32 %v626, %v683
        %685 = vmatmul.f32.gmra.mxu0 %v608
        %v686 = vpop.f32.mrf.mxu0
        %v687 = vadd.f32 %v626, %v686
        %688 = vmatmul.f32.gmra.mxu0 %v609
        %v689 = vpop.f32.mrf.mxu0
        %v690 = vadd.f32 %v626, %v689
        %691 = vdwg.mxu0
        %v692 = vmax.f32 %v645, 0.0
        %v693 = vmax.f32 %v648, 0.0
        %v694 = vmax.f32 %v651, 0.0
        %v695 = vmax.f32 %v654, 0.0
        %v696 = vmax.f32 %v657, 0.0
        %v697 = vmax.f32 %v660, 0.0
        %v698 = vmax.f32 %v663, 0.0
        %v699 = vmax.f32 %v666, 0.0
        %v700 = vmax.f32 %v669, 0.0
        %v701 = vmax.f32 %v672, 0.0
        %v702 = vmax.f32 %v675, 0.0
        %v703 = vmax.f32 %v678, 0.0
        %v704 = vmax.f32 %v681, 0.0
        %v705 = vmax.f32 %v684, 0.0
        %v706 = vmax.f32 %v687, 0.0
        %v707 = vmax.f32 %v690, 0.0
        %v708 = vld [vmem:[#allocation2 + $0x138] sm:$0xff]
        %v709 = vld [vmem:[#allocation2 + $0x140] sm:$0xff]
        %v710 = vld [vmem:[#allocation2 + $0x148] sm:$0xff]
        %v711 = vld [vmem:[#allocation2 + $0x150] sm:$0xff]
        %v712 = vld [vmem:[#allocation2 + $0x158] sm:$0xff]
        %v713 = vld [vmem:[#allocation2 + $0x160] sm:$0xff]
        %v714 = vld [vmem:[#allocation2 + $0x168] sm:$0xff]
        %v715 = vld [vmem:[#allocation2 + $0x170] sm:$0xff]
        %v716 = vld [vmem:[#allocation2 + $0x178] sm:$0xff]
        %v717 = vld [vmem:[#allocation2 + $0x180] sm:$0xff]
        %v718 = vld [vmem:[#allocation2 + $0x188] sm:$0xff]
        %v719 = vld [vmem:[#allocation2 + $0x190] sm:$0xff]
        %v720 = vld [vmem:[#allocation2 + $0x198] sm:$0xff]
        %v721 = vld [vmem:[#allocation2 + $0x1a0] sm:$0xff]
        %v722 = vld [vmem:[#allocation2 + $0x1a8] sm:$0xff]
        %v723 = vld [vmem:[#allocation2 + $0x1b0] sm:$0xff]
        %v724 = vperm.slane %v211, 3
        %725 = vmatpush.msra.mxu0 %v723
        %726 = vmatpush.msra.mxu0 %v722
        %727 = vmatpush.msra.mxu0 %v721
        %728 = vmatpush.msra.mxu0 %v720
        %729 = vmatpush.msra.mxu0 %v719
        %730 = vmatpush.msra.mxu0 %v718
        %731 = vmatpush.msra.mxu0 %v717
        %732 = vmatpush.msra.mxu0 %v716
        %733 = vmatpush.msra.mxu0 %v715
        %734 = vmatpush.msra.mxu0 %v714
        %735 = vmatpush.msra.mxu0 %v713
        %736 = vmatpush.msra.mxu0 %v712
        %737 = vmatpush.msra.mxu0 %v711
        %738 = vmatpush.msra.mxu0 %v710
        %739 = vmatpush.msra.mxu0 %v709
        %740 = vmatpush.msra.mxu0 %v708
        %741 = vmatmul.f32.gmra.mxu0 %v692
        %v742 = vpop.f32.mrf.mxu0
        %v743 = vadd.f32 %v724, %v742
        %744 = vmatmul.f32.gmra.mxu0 %v693
        %v745 = vpop.f32.mrf.mxu0
        %v746 = vadd.f32 %v724, %v745
        %747 = vmatmul.f32.gmra.mxu0 %v694
        %v748 = vpop.f32.mrf.mxu0
        %v749 = vadd.f32 %v724, %v748
        %750 = vmatmul.f32.gmra.mxu0 %v695
        %v751 = vpop.f32.mrf.mxu0
        %v752 = vadd.f32 %v724, %v751
        %753 = vmatmul.f32.gmra.mxu0 %v696
        %v754 = vpop.f32.mrf.mxu0
        %v755 = vadd.f32 %v724, %v754
        %756 = vmatmul.f32.gmra.mxu0 %v697
        %v757 = vpop.f32.mrf.mxu0
        %v758 = vadd.f32 %v724, %v757
        %759 = vmatmul.f32.gmra.mxu0 %v698
        %v760 = vpop.f32.mrf.mxu0
        %v761 = vadd.f32 %v724, %v760
        %762 = vmatmul.f32.gmra.mxu0 %v699
        %v763 = vpop.f32.mrf.mxu0
        %v764 = vadd.f32 %v724, %v763
        %765 = vmatmul.f32.gmra.mxu0 %v700
        %v766 = vpop.f32.mrf.mxu0
        %v767 = vadd.f32 %v724, %v766
        %768 = vmatmul.f32.gmra.mxu0 %v701
        %v769 = vpop.f32.mrf.mxu0
        %v770 = vadd.f32 %v724, %v769
        %771 = vmatmul.f32.gmra.mxu0 %v702
        %v772 = vpop.f32.mrf.mxu0
        %v773 = vadd.f32 %v724, %v772
        %774 = vmatmul.f32.gmra.mxu0 %v703
        %v775 = vpop.f32.mrf.mxu0
        %v776 = vadd.f32 %v724, %v775
        %777 = vmatmul.f32.gmra.mxu0 %v704
        %v778 = vpop.f32.mrf.mxu0
        %v779 = vadd.f32 %v724, %v778
        %780 = vmatmul.f32.gmra.mxu0 %v705
        %v781 = vpop.f32.mrf.mxu0
        %v782 = vadd.f32 %v724, %v781
        %783 = vmatmul.f32.gmra.mxu0 %v706
        %v784 = vpop.f32.mrf.mxu0
        %v785 = vadd.f32 %v724, %v784
        %786 = vmatmul.f32.gmra.mxu0 %v707
        %v787 = vpop.f32.mrf.mxu0
        %v788 = vadd.f32 %v724, %v787
        %789 = vdwg.mxu0
        %v790 = vmax.f32 %v743, 0.0
        %v791 = vmax.f32 %v746, 0.0
        %v792 = vmax.f32 %v749, 0.0
        %v793 = vmax.f32 %v752, 0.0
        %v794 = vmax.f32 %v755, 0.0
        %v795 = vmax.f32 %v758, 0.0
        %v796 = vmax.f32 %v761, 0.0
        %v797 = vmax.f32 %v764, 0.0
        %v798 = vmax.f32 %v767, 0.0
        %v799 = vmax.f32 %v770, 0.0
        %v800 = vmax.f32 %v773, 0.0
        %v801 = vmax.f32 %v776, 0.0
        %v802 = vmax.f32 %v779, 0.0
        %v803 = vmax.f32 %v782, 0.0
        %v804 = vmax.f32 %v785, 0.0
        %v805 = vmax.f32 %v788, 0.0
        %v806 = vld [vmem:[#allocation2 + $0x1b8] sm:$0xff]
        %v807 = vld [vmem:[#allocation2 + $0x1c0] sm:$0xff]
        %v808 = vld [vmem:[#allocation2 + $0x1c8] sm:$0xff]
        %v809 = vld [vmem:[#allocation2 + $0x1d0] sm:$0xff]
        %v810 = vld [vmem:[#allocation2 + $0x1d8] sm:$0xff]
        %v811 = vld [vmem:[#allocation2 + $0x1e0] sm:$0xff]
        %v812 = vld [vmem:[#allocation2 + $0x1e8] sm:$0xff]
        %v813 = vld [vmem:[#allocation2 + $0x1f0] sm:$0xff]
        %v814 = vld [vmem:[#allocation2 + $0x1f8] sm:$0xff]
        %v815 = vld [vmem:[#allocation2 + $0x200] sm:$0xff]
        %v816 = vld [vmem:[#allocation2 + $0x208] sm:$0xff]
        %v817 = vld [vmem:[#allocation2 + $0x210] sm:$0xff]
        %v818 = vld [vmem:[#allocation2 + $0x218] sm:$0xff]
        %v819 = vld [vmem:[#allocation2 + $0x220] sm:$0xff]
        %v820 = vld [vmem:[#allocation2 + $0x228] sm:$0xff]
        %v821 = vld [vmem:[#allocation2 + $0x230] sm:$0xff]
        %v822 = vperm.slane %v211, 4
        %823 = vmatpush.msra.mxu0 %v821
        %824 = vmatpush.msra.mxu0 %v820
        %825 = vmatpush.msra.mxu0 %v819
        %826 = vmatpush.msra.mxu0 %v818
        %827 = vmatpush.msra.mxu0 %v817
        %828 = vmatpush.msra.mxu0 %v816
        %829 = vmatpush.msra.mxu0 %v815
        %830 = vmatpush.msra.mxu0 %v814
        %831 = vmatpush.msra.mxu0 %v813
        %832 = vmatpush.msra.mxu0 %v812
        %833 = vmatpush.msra.mxu0 %v811
        %834 = vmatpush.msra.mxu0 %v810
        %835 = vmatpush.msra.mxu0 %v809
        %836 = vmatpush.msra.mxu0 %v808
        %837 = vmatpush.msra.mxu0 %v807
        %838 = vmatpush.msra.mxu0 %v806
        %839 = vmatmul.f32.gmra.mxu0 %v790
        %v840 = vpop.f32.mrf.mxu0
        %v841 = vadd.f32 %v822, %v840
        %842 = vmatmul.f32.gmra.mxu0 %v791
        %v843 = vpop.f32.mrf.mxu0
        %v844 = vadd.f32 %v822, %v843
        %845 = vmatmul.f32.gmra.mxu0 %v792
        %v846 = vpop.f32.mrf.mxu0
        %v847 = vadd.f32 %v822, %v846
        %848 = vmatmul.f32.gmra.mxu0 %v793
        %v849 = vpop.f32.mrf.mxu0
        %v850 = vadd.f32 %v822, %v849
        %851 = vmatmul.f32.gmra.mxu0 %v794
        %v852 = vpop.f32.mrf.mxu0
        %v853 = vadd.f32 %v822, %v852
        %854 = vmatmul.f32.gmra.mxu0 %v795
        %v855 = vpop.f32.mrf.mxu0
        %v856 = vadd.f32 %v822, %v855
        %857 = vmatmul.f32.gmra.mxu0 %v796
        %v858 = vpop.f32.mrf.mxu0
        %v859 = vadd.f32 %v822, %v858
        %860 = vmatmul.f32.gmra.mxu0 %v797
        %v861 = vpop.f32.mrf.mxu0
        %v862 = vadd.f32 %v822, %v861
        %863 = vmatmul.f32.gmra.mxu0 %v798
        %v864 = vpop.f32.mrf.mxu0
        %v865 = vadd.f32 %v822, %v864
        %866 = vmatmul.f32.gmra.mxu0 %v799
        %v867 = vpop.f32.mrf.mxu0
        %v868 = vadd.f32 %v822, %v867
        %869 = vmatmul.f32.gmra.mxu0 %v800
        %v870 = vpop.f32.mrf.mxu0
        %v871 = vadd.f32 %v822, %v870
        %872 = vmatmul.f32.gmra.mxu0 %v801
        %v873 = vpop.f32.mrf.mxu0
        %v874 = vadd.f32 %v822, %v873
        %875 = vmatmul.f32.gmra.mxu0 %v802
        %v876 = vpop.f32.mrf.mxu0
        %v877 = vadd.f32 %v822, %v876
        %878 = vmatmul.f32.gmra.mxu0 %v803
        %v879 = vpop.f32.mrf.mxu0
        %v880 = vadd.f32 %v822, %v879
        %881 = vmatmul.f32.gmra.mxu0 %v804
        %v882 = vpop.f32.mrf.mxu0
        %v883 = vadd.f32 %v822, %v882
        %884 = vmatmul.f32.gmra.mxu0 %v805
        %v885 = vpop.f32.mrf.mxu0
        %v886 = vadd.f32 %v822, %v885
        %887 = vdwg.mxu0
        %v888 = vlaneseq
        %v889 = vand.u32 %v888, 127
        %vm890 = vcmp.ge.s32.totalorder %v889, 16
        %vm891 = vcmp.lt.s32.totalorder %v889, 32
        %vm892 = vmand %vm890, %vm891
        %v893 = vmax.f32 %v841, -2.0
        %v894 = vmax.f32 %v844, -2.0
        %v895 = vmax.f32 %v847, -2.0
        %v896 = vmax.f32 %v850, -2.0
        %v897 = vmax.f32 %v853, -2.0
        %v898 = vmax.f32 %v856, -2.0
        %v899 = vmax.f32 %v859, -2.0
        %v900 = vmax.f32 %v862, -2.0
        %v901 = vmax.f32 %v865, -2.0
        %v902 = vmax.f32 %v868, -2.0
        %v903 = vmax.f32 %v871, -2.0
        %v904 = vmax.f32 %v874, -2.0
        %v905 = vmax.f32 %v877, -2.0
        %v906 = vmax.f32 %v880, -2.0
        %v907 = vmax.f32 %v883, -2.0
        %v908 = vmax.f32 %v886, -2.0
        %v909 = vmin.f32 %v893, 2.0
        %v910 = vmin.f32 %v894, 2.0
        %v911 = vmin.f32 %v895, 2.0
        %v912 = vmin.f32 %v896, 2.0
        %v913 = vmin.f32 %v897, 2.0
        %v914 = vmin.f32 %v898, 2.0
        %v915 = vmin.f32 %v899, 2.0
        %v916 = vmin.f32 %v900, 2.0
        %v917 = vmin.f32 %v901, 2.0
        %v918 = vmin.f32 %v902, 2.0
        %v919 = vmin.f32 %v903, 2.0
        %v920 = vmin.f32 %v904, 2.0
        %v921 = vmin.f32 %v905, 2.0
        %v922 = vmin.f32 %v906, 2.0
        %v923 = vmin.f32 %v907, 2.0
        %v924 = vmin.f32 %v908, 2.0
        %v925 = vmul.f32 %v909, 1.442695
        %v926 = vpow.pop %v925
        %v927 = vmul.f32 %v910, 1.442695
        %v928 = vpow.pop %v927
        %v929 = vmul.f32 %v911, 1.442695
        %v930 = vpow.pop %v929
        %v931 = vmul.f32 %v912, 1.442695
        %v932 = vpow.pop %v931
        %v933 = vmul.f32 %v913, 1.442695
        %v934 = vpow.pop %v933
        %v935 = vmul.f32 %v914, 1.442695
        %v936 = vpow.pop %v935
        %v937 = vmul.f32 %v915, 1.442695
        %v938 = vpow.pop %v937
        %v939 = vmul.f32 %v916, 1.442695
        %v940 = vpow.pop %v939
        %v941 = vmul.f32 %v917, 1.442695
        %v942 = vpow.pop %v941
        %v943 = vmul.f32 %v918, 1.442695
        %v944 = vpow.pop %v943
        %v945 = vmul.f32 %v919, 1.442695
        %v946 = vpow.pop %v945
        %v947 = vmul.f32 %v920, 1.442695
        %v948 = vpow.pop %v947
        %v949 = vmul.f32 %v921, 1.442695
        %v950 = vpow.pop %v949
        %v951 = vmul.f32 %v922, 1.442695
        %v952 = vpow.pop %v951
        %v953 = vmul.f32 %v923, 1.442695
        %v954 = vpow.pop %v953
        %v955 = vmul.f32 %v924, 1.442695
        %v956 = vpow.pop %v955
        %v957 = vsel %vm892, %v926, %v841
        %v958 = vsel %vm892, %v928, %v844
        %v959 = vsel %vm892, %v930, %v847
        %v960 = vsel %vm892, %v932, %v850
        %v961 = vsel %vm892, %v934, %v853
        %v962 = vsel %vm892, %v936, %v856
        %v963 = vsel %vm892, %v938, %v859
        %v964 = vsel %vm892, %v940, %v862
        %v965 = vsel %vm892, %v942, %v865
        %v966 = vsel %vm892, %v944, %v868
        %v967 = vsel %vm892, %v946, %v871
        %v968 = vsel %vm892, %v948, %v874
        %v969 = vsel %vm892, %v950, %v877
        %v970 = vsel %vm892, %v952, %v880
        %v971 = vsel %vm892, %v954, %v883
        %v972 = vsel %vm892, %v956, %v886
        %973 = vst [vmem:[%s197] sm:$0xff] %v957
        %974 = vst [vmem:[%s197 + $0x8] sm:$0xff] %v958
        %975 = vst [vmem:[%s197 + $0x10] sm:$0xff] %v959
        %976 = vst [vmem:[%s197 + $0x18] sm:$0xff] %v960
        %977 = vst [vmem:[%s197 + $0x20] sm:$0xff] %v961
        %978 = vst [vmem:[%s197 + $0x28] sm:$0xff] %v962
        %979 = vst [vmem:[%s197 + $0x30] sm:$0xff] %v963
        %980 = vst [vmem:[%s197 + $0x38] sm:$0xff] %v964
        %981 = vst [vmem:[%s197 + $0x40] sm:$0xff] %v965
        %982 = vst [vmem:[%s197 + $0x48] sm:$0xff] %v966
        %983 = vst [vmem:[%s197 + $0x50] sm:$0xff] %v967
        %984 = vst [vmem:[%s197 + $0x58] sm:$0xff] %v968
        %985 = vst [vmem:[%s197 + $0x60] sm:$0xff] %v969
        %986 = vst [vmem:[%s197 + $0x68] sm:$0xff] %v970
        %987 = vst [vmem:[%s197 + $0x70] sm:$0xff] %v971
        %988 = vst [vmem:[%s197 + $0x78] sm:$0xff] %v972
        %s989 = sand.u32 %s99, 1
        %s990 = scalar_lea.sflag [#allocation4], %s989
        %s991 = sand.u32 %s99, 1
        %s992 = smul.addr %s991, 128
        %s993 = scalar_lea.vmem [#allocation5], %s992
        // Predicated region
        $region37: #{tpu_custom_call.1} parent=31 // pred_check
          %p994 = pneg %p109
        $region38: #{tpu_custom_call.1} parent=31 // pred_check_branch
          %996 = sbr.rel (%p994) target = $region40
        $region39: #{tpu_custom_call.1} parent=31 // pred_region
          %s997 = smul.u32 16, %s18
          %999 = vsyncadd %s990, 0
          %s1000 = smul.addr %s997, 8
          %s1001 = scalar_lea.hbm %s3, %s1000
          %s1002 = sshll.u32 %s993, 4
          %s1003 = int_to_ptr.vmem [resolvable:$true] %s1002
          %s1004 = sshll.u32 %s1001, 4
          %s1005 = int_to_ptr.hbm [resolvable:$true] %s1004
          %1010 = dma.vmem_to_hbm [thread:$0]  %s1003, 2048, %s1005, %s990, 128, 128, 8
        $region40: #{tpu_custom_call.1} parent=31 // pred_fallthru
          _
      $region32: #{tpu_custom_call.1} parent=5 // pred_fallthru
        _
      %p1011 = scmp.le.s32.totalorder 2, %s13
      // Predicated region
      $region41: #{tpu_custom_call.1} parent=5 // pred_check
        %p1012 = pneg %p1011
      $region42: #{tpu_custom_call.1} parent=5 // pred_check_branch
        %1014 = sbr.rel (%p1012) target = $region44
      $region43: #{tpu_custom_call.1} parent=5 // pred_region
        %s1015 = ssub.s32 %s13, 2
        // Predicated region
        $region45: #{tpu_custom_call.1} parent=43 // pred_check
          %p1016 = pneg %p115
        $region46: #{tpu_custom_call.1} parent=43 // pred_check_branch
          %1018 = sbr.rel (%p1016) target = $region48
        $region47: #{tpu_custom_call.1} parent=43 // pred_region
          %s1019 = sand.u32 %s100, 1
          %s1020 = scalar_lea.sflag [#allocation4], %s1019
          %s1021 = sand.u32 %s100, 1
          %s1022 = smul.addr %s1021, 128
          %s1023 = scalar_lea.vmem [#allocation5], %s1022
          %1025 = dma.done %s1020, 2048
        $region48: #{tpu_custom_call.1} parent=43 // pred_fallthru
          _
      $region44: #{tpu_custom_call.1} parent=5 // pred_fallthru
        _
    $region6: #{tpu_custom_call.1} parent=1 // loop_footer
      %s17 = sadd.s32 1, %s13
    $region7: #{tpu_custom_call.1} parent=1 // loop_footer_branch
      %12 = sbr.rel target = $region3
    $region8: #{tpu_custom_call.1} parent=1 // loop_exit
      _
    %1026 = vsyncpa [#allocation3], 1
    %s1027 = scalar_lea.sflag [#allocation3], 1
    %1028 = vsyncpa %s1027, 1
    %1029 = vsyncpa [#allocation4], 1
    %s1030 = scalar_lea.sflag [#allocation4], 1
    %1031 = vsyncpa %s1030, 1

</llo_original>
